<compile_context>
chip_gen: v7x
topology: tpu7x:2x2x1
jax: 0.10.0
libtpu: 0.0.40
codegen_flags: <defaults>
</compile_context>

<pallas_src>
import functools

import jax
import jax.numpy as jnp
from jax import lax
from jax.experimental import pallas as pl
from jax.experimental.pallas import tpu as pltpu


def _bert_embeddings_kernel(ids_ref,                       # scalar-prefetch (SMEM), flat (B*S,)
                            word_hbm,                      # (V, H) in HBM (pl.ANY)
                            type_ref, pos_ref, tt_ref,     # VMEM tiles
                            gamma_ref, beta_ref,
                            o_ref,                         # (tm, H) output tile
                            gbuf, sem,                     # (2*tm, H) gather scratch + DMA sems
                            *, eps, tm, seq_len, type_vocab):
    j = pl.program_id(0)          # seq-tile index (parallel axis)
    b = pl.program_id(1)          # batch index (arbitrary / innermost axis)
    nb = pl.num_programs(1)
    vocab = word_hbm.shape[0]
    slot = b % 2

    def issue_gather(tile_j, tile_b, dst_slot):
        tok0 = tile_b * seq_len + tile_j * tm
        base = dst_slot * tm

        def body(t, carry):
            wid = ids_ref[tok0 + t]
            wid = jnp.clip(wid, 0, vocab - 1)      # guard against OOB ids (no runtime DMA check)
            pltpu.make_async_copy(
                word_hbm.at[pl.ds(wid, 1), :],
                gbuf.at[pl.ds(base + t, 1), :],
                sem.at[dst_slot]).start()
            return carry

        lax.fori_loop(0, tm, body, 0)

    # Prime the pipeline at the start of each inner batch loop (b == 0).  The
    # double-buffer carry never crosses the parallel seq-tile axis -> megacore safe.
    @pl.when(b == 0)
    def _():
        issue_gather(j, 0, 0)

    # Prefetch the next batch's tile into the other slot while we compute this one.
    @pl.when(b + 1 < nb)
    def _():
        issue_gather(j, b + 1, 1 - slot)

    # Vectorized token-type embedding + positional add (VPU work that overlaps
    # with the in-flight gather DMAs).
    tt = tt_ref[...]                                   # (tm, 1) int32
    type_f32 = type_ref[...].astype(jnp.float32)       # (TV, H), TV is tiny (2 for BERT)
    x_rest = pos_ref[...].astype(jnp.float32)          # (tm, H)
    for v in range(type_vocab):
        x_rest = x_rest + (tt == v).astype(jnp.float32) * type_f32[v][None, :]

    # Wait for this tile's tm gathered word rows (one (1, H) wait per issued copy).
    def wait_body(t, carry):
        pltpu.make_async_copy(
            word_hbm.at[pl.ds(0, 1), :],
            gbuf.at[pl.ds(0, 1), :],
            sem.at[slot]).wait()
        return carry

    lax.fori_loop(0, tm, wait_body, 0)

    base = pl.multiple_of(slot * tm, 8)
    x = gbuf[pl.ds(base, tm), :].astype(jnp.float32) + x_rest

    # TF-style LayerNorm, stats in f32, single materialization of x.
    mean = jnp.mean(x, axis=-1, keepdims=True)
    var = jnp.mean(x * x, axis=-1, keepdims=True) - mean * mean
    inv = lax.rsqrt(var + eps)
    gamma = gamma_ref[...].astype(jnp.float32)
    beta = beta_ref[...].astype(jnp.float32)
    o_ref[...] = ((x - mean) * inv * gamma + beta).astype(o_ref.dtype)
    # TODO(synk): dropout is treated as eval-mode identity; for training add
    # pltpu.prng_seed + pltpu.prng_random_bits masking here.


def bert_embeddings_forward(input_ids, positional_enc, word_table, type_table,
                            ln_w, ln_b, token_type_ids=None, *, eps=1e-12, tm=None):
    """input_ids: (B, S) int; positional_enc: (S, H); word_table: (V, H);
    type_table: (TV, H); ln_w/ln_b: (H,).  Returns (B, S, H)."""
    B, S = input_ids.shape
    V, H = word_table.shape
    TV = type_table.shape[0]

    if token_type_ids is None:
        token_type_ids = jnp.zeros_like(input_ids)

    # Token-tile size: biggest multiple-of-8 divisor of S (table is in HBM now,
    # so big tiles only cost ~5 x tm x H x 4 bytes of VMEM).
    if tm is None:
        tm = S
        for cand in (1024, 512, 256, 128, 64, 32, 16, 8):
            if S % cand == 0:
                tm = cand
                break
    assert S % tm == 0, f"token tile {tm} must divide sequence length {S}"

    ids_flat = input_ids.reshape(-1).astype(jnp.int32)
    tt3d = token_type_ids.astype(jnp.int32).reshape(B, S, 1)
    gamma2d = ln_w.reshape(1, H)
    beta2d = ln_b.reshape(1, H)

    out_dtype = word_table.dtype
    itemsize = jnp.dtype(word_table.dtype).itemsize
    out_item = jnp.dtype(out_dtype).itemsize

    kernel = functools.partial(_bert_embeddings_kernel, eps=eps, tm=tm,
                               seq_len=S, type_vocab=TV)

    # Per-step VMEM footprint (double-buffered pos / out / tt tiles, 2-slot gather
    # scratch, tiny resident inputs) with generous headroom; never below the v6e
    # default and never above v7x's 64 MiB physical VMEM.
    footprint = (2 * tm * H * itemsize            # positional tile (double-buffered)
                 + 2 * tm * H * out_item          # output tile (double-buffered)
                 + 2 * tm * 128 * 4               # token-type tile (lane-padded)
                 + 2 * tm * H * itemsize          # gather scratch (2 slots)
                 + (TV + 2) * H * itemsize * 2)   # type table + gamma/beta
    vmem_limit = min(max(2 * footprint + (8 << 20), 32 << 20), 64 << 20)

    bytes_accessed = int(B * S * H * itemsize     # gathered word rows
                         + B * S * H * out_item   # output
                         + S * H * itemsize       # positional (reused across batch)
                         + B * S * 4              # token-type ids
                         + TV * H * itemsize)     # type table (once)

    out = pl.pallas_call(
        kernel,
        out_shape=jax.ShapeDtypeStruct((B, S, H), out_dtype),
        grid_spec=pltpu.PrefetchScalarGridSpec(
            num_scalar_prefetch=1,                # ids_flat -> SMEM
            grid=(S // tm, B),                    # batch innermost -> pos tile reused
            in_specs=[
                pl.BlockSpec(memory_space=pl.ANY),                        # word table in HBM
                pl.BlockSpec((TV, H), lambda j, b, ids: (0, 0)),          # type table (tiny, resident)
                pl.BlockSpec((tm, H), lambda j, b, ids: (j, 0)),          # positional tile
                pl.BlockSpec((None, tm, 1), lambda j, b, ids: (b, j, 0)),  # token-type ids tile
                pl.BlockSpec((1, H), lambda j, b, ids: (0, 0)),           # LN gamma
                pl.BlockSpec((1, H), lambda j, b, ids: (0, 0)),           # LN beta
            ],
            # Lane-dense (tm, H) output tile; batch dim squeezed out of the kernel.
            out_specs=pl.BlockSpec((None, tm, H), lambda j, b, ids: (b, j, 0)),
            scratch_shapes=[
                pltpu.VMEM((2 * tm, H), word_table.dtype),   # 2-slot gather buffer
                pltpu.SemaphoreType.DMA((2,)),
            ],
        ),
        compiler_params=pltpu.CompilerParams(
            dimension_semantics=("parallel", "arbitrary"),
            vmem_limit_bytes=int(vmem_limit),
        ),
        cost_estimate=pl.CostEstimate(
            flops=int(10 * B * S * H),
            bytes_accessed=bytes_accessed,
            transcendentals=int(B * S),
        ),
    )(ids_flat, word_table, type_table, positional_enc, tt3d, gamma2d, beta2d)

    return out


if __name__ == "__main__":
    # Small config: batch=2, seq=16, hidden=256, vocab=128, type_vocab=2, tm=8
    # (so both the seq-tile grid axis and the batch double-buffering are exercised).
    B, S, H = 2, 16, 256
    V, TV = 128, 2
    TM = 8

    key = jax.random.PRNGKey(0)
    k1, k2, k3, k4 = jax.random.split(key, 4)

    input_ids = jax.random.randint(k1, (B, S), 0, V, dtype=jnp.int32)
    token_type_ids = jnp.concatenate(
        [jnp.zeros((B, S // 2), jnp.int32), jnp.ones((B, S // 2), jnp.int32)], axis=1)

    # Embedding tables with L2-normalized rows (mimics the module's init post-processing).
    word_table = jax.random.normal(k2, (V, H), dtype=jnp.float32)
    word_table = word_table / (jnp.linalg.norm(word_table, axis=1, keepdims=True) + 1e-8)
    type_table = jax.random.normal(k3, (TV, H), dtype=jnp.float32)
    type_table = type_table / (jnp.linalg.norm(type_table, axis=1, keepdims=True) + 1e-8)

    positional_enc = 0.02 * jax.random.normal(k4, (S, H), dtype=jnp.float32)
    ln_w = jnp.ones((H,), jnp.float32)   # BertLayerNorm.weight init
    ln_b = jnp.zeros((H,), jnp.float32)  # BertLayerNorm.bias init

    out = bert_embeddings_forward(input_ids, positional_enc, word_table, type_table,
                                  ln_w, ln_b, token_type_ids=token_type_ids, tm=TM)
    out = jax.block_until_ready(out)

    # Reference in plain JAX (eval mode: dropout is identity).
    emb = word_table[input_ids] + positional_enc[None, :, :] + type_table[token_type_ids]
    u = emb.mean(-1, keepdims=True)
    s = ((emb - u) ** 2).mean(-1, keepdims=True)
    ref = ln_w * ((emb - u) / jnp.sqrt(s + 1e-12)) + ln_b

    assert out.shape == (B, S, H)
    max_err = float(jnp.max(jnp.abs(out - ref)))
    assert jnp.allclose(out, ref, atol=1e-4, rtol=1e-4), f"max abs err = {max_err}"

    print("KERNEL_OK")
</pallas_src>

<mosaic_0001>
module attributes {stable_mosaic.version = 11 : i64} {
  func.func @_bert_embeddings_kernel(%arg0: i32, %arg1: i32, %arg2: memref<32xi32, #tpu.memory_space<smem>>, %arg3: memref<128x256xf32, #tpu.memory_space<any>>, %arg4: memref<2x256xf32, #tpu.memory_space<vmem>>, %arg5: memref<8x256xf32, #tpu.memory_space<vmem>>, %arg6: memref<1x8x1xi32, #tpu.memory_space<vmem>>, %arg7: memref<1x256xf32, #tpu.memory_space<vmem>>, %arg8: memref<1x256xf32, #tpu.memory_space<vmem>>, %arg9: memref<1x8x256xf32, #tpu.memory_space<vmem>>, %arg10: memref<16x256xf32, #tpu.memory_space<vmem>>, %arg11: memref<2x!tpu.dma_semaphore, #tpu.memory_space<semaphore_mem>>) attributes {dimension_semantics = [#tpu.dimension_semantics<parallel>, #tpu.dimension_semantics<arbitrary>], iteration_bounds = array<i64: 2, 2>, scalar_prefetch = 1 : i64, scratch_operands = 2 : i64, tpu.core_type = #tpu.core_type<tc>, window_params = [{}, {pipeline_mode = #tpu.pipeline_mode<synchronous>, transform_indices = @transform_1, window_bounds = array<i64: 2, 256>}, {transform_indices = @transform_2, window_bounds = array<i64: 8, 256>}, {transform_indices = @transform_3, window_bounds = array<i64: 1, 8, 1>}, {pipeline_mode = #tpu.pipeline_mode<synchronous>, transform_indices = @transform_4, window_bounds = array<i64: 1, 256>}, {pipeline_mode = #tpu.pipeline_mode<synchronous>, transform_indices = @transform_5, window_bounds = array<i64: 1, 256>}, {transform_indices = @transform_6, window_bounds = array<i64: 1, 8, 256>}]} {
    %c2_i32 = arith.constant 2 : i32
    %c0_i32 = arith.constant 0 : i32
    %0 = arith.cmpi eq, %c2_i32, %c0_i32 : i32
    %c1_i32 = arith.constant 1 : i32
    %1 = arith.select %0, %c1_i32, %c2_i32 : i32
    %2 = arith.remsi %arg1, %1 : i32
    %c0_i32_0 = arith.constant 0 : i32
    %3 = arith.cmpi ne, %2, %c0_i32_0 : i32
    %c0_i32_1 = arith.constant 0 : i32
    %4 = arith.cmpi slt, %2, %c0_i32_1 : i32
    %c0_i32_2 = arith.constant 0 : i32
    %5 = arith.cmpi slt, %1, %c0_i32_2 : i32
    %6 = arith.xori %4, %5 : i1
    %7 = arith.andi %6, %3 : i1
    %8 = arith.addi %2, %1 : i32
    %9 = arith.select %7, %8, %2 : i32
    %c0_i32_3 = arith.constant 0 : i32
    %10 = arith.cmpi eq, %arg1, %c0_i32_3 : i32
    %11 = arith.extui %10 : i1 to i32
    %c0_i32_4 = arith.constant 0 : i32
    %12 = arith.cmpi ne, %11, %c0_i32_4 : i32
    scf.if %12 {
      %c8_i32_31 = arith.constant 8 : i32
      %76 = arith.muli %arg0, %c8_i32_31 : i32
      %c0_i32_32 = arith.constant 0 : i32
      %77 = arith.addi %c0_i32_32, %76 : i32
      %c0_i32_33 = arith.constant 0 : i32
      %c8_i32_34 = arith.constant 8 : i32
      %78 = arith.addi %c0_i32_33, %c8_i32_34 : i32
      %c1_i32_35 = arith.constant 1 : i32
      scf.for %arg12 = %c0_i32_33 to %78 step %c1_i32_35  : i32 {
        %79 = arith.addi %77, %arg12 : i32
        %80 = arith.index_cast %79 : i32 to index
        %81 = memref.load %arg2[%80] : memref<32xi32, #tpu.memory_space<smem>>
        %c0_i32_37 = arith.constant 0 : i32
        %c127_i32 = arith.constant 127 : i32
        %82 = arith.maxsi %c0_i32_37, %81 : i32
        %83 = arith.minsi %c127_i32, %82 : i32
        %c0_i32_38 = arith.constant 0 : i32
        %84 = arith.addi %c0_i32_38, %arg12 : i32
        %c0_i32_39 = arith.constant 0 : i32
        %c0_i32_40 = arith.constant 0 : i32
        %85 = tpu.memref_slice %arg3[%83, %c0_i32_40] : memref<128x256xf32, #tpu.memory_space<any>> -> memref<1x256xf32, #tpu.memory_space<any>>
        %c0_i32_41 = arith.constant 0 : i32
        %86 = tpu.memref_slice %arg10[%84, %c0_i32_41] : memref<16x256xf32, #tpu.memory_space<vmem>> -> memref<1x256xf32, #tpu.memory_space<vmem>>
        %87 = tpu.memref_slice %arg11[%c0_i32_39] : memref<2x!tpu.dma_semaphore, #tpu.memory_space<semaphore_mem>> -> memref<1x!tpu.dma_semaphore, #tpu.memory_space<semaphore_mem>>
        %88 = tpu.memref_squeeze %87 : memref<1x!tpu.dma_semaphore, #tpu.memory_space<semaphore_mem>> -> memref<!tpu.dma_semaphore, #tpu.memory_space<semaphore_mem>>
        tpu.enqueue_dma source(%85 : memref<1x256xf32, #tpu.memory_space<any>>) target(%86 : memref<1x256xf32, #tpu.memory_space<vmem>>) target_semaphore(%88 : memref<!tpu.dma_semaphore, #tpu.memory_space<semaphore_mem>>)
      }
      %c8_i32_36 = arith.constant 8 : i32
    } else {
    }
    %c1_i32_5 = arith.constant 1 : i32
    %13 = arith.addi %arg1, %c1_i32_5 : i32
    %c2_i32_6 = arith.constant 2 : i32
    %14 = arith.cmpi slt, %13, %c2_i32_6 : i32
    %15 = arith.extui %14 : i1 to i32
    %c0_i32_7 = arith.constant 0 : i32
    %16 = arith.cmpi ne, %15, %c0_i32_7 : i32
    scf.if %16 {
      %c1_i32_31 = arith.constant 1 : i32
      %76 = arith.addi %arg1, %c1_i32_31 : i32
      %c1_i32_32 = arith.constant 1 : i32
      %77 = arith.subi %c1_i32_32, %9 : i32
      %c16_i32 = arith.constant 16 : i32
      %78 = arith.muli %76, %c16_i32 : i32
      %c8_i32_33 = arith.constant 8 : i32
      %79 = arith.muli %arg0, %c8_i32_33 : i32
      %80 = arith.addi %78, %79 : i32
      %c8_i32_34 = arith.constant 8 : i32
      %81 = arith.muli %77, %c8_i32_34 : i32
      %c0_i32_35 = arith.constant 0 : i32
      %c8_i32_36 = arith.constant 8 : i32
      %82 = arith.addi %c0_i32_35, %c8_i32_36 : i32
      %c1_i32_37 = arith.constant 1 : i32
      scf.for %arg12 = %c0_i32_35 to %82 step %c1_i32_37  : i32 {
        %83 = arith.addi %80, %arg12 : i32
        %84 = arith.index_cast %83 : i32 to index
        %85 = memref.load %arg2[%84] : memref<32xi32, #tpu.memory_space<smem>>
        %c0_i32_39 = arith.constant 0 : i32
        %c127_i32 = arith.constant 127 : i32
        %86 = arith.maxsi %c0_i32_39, %85 : i32
        %87 = arith.minsi %c127_i32, %86 : i32
        %88 = arith.addi %81, %arg12 : i32
        %c0_i32_40 = arith.constant 0 : i32
        %89 = tpu.memref_slice %arg3[%87, %c0_i32_40] : memref<128x256xf32, #tpu.memory_space<any>> -> memref<1x256xf32, #tpu.memory_space<any>>
        %c0_i32_41 = arith.constant 0 : i32
        %90 = tpu.memref_slice %arg10[%88, %c0_i32_41] : memref<16x256xf32, #tpu.memory_space<vmem>> -> memref<1x256xf32, #tpu.memory_space<vmem>>
        %91 = tpu.memref_slice %arg11[%77] : memref<2x!tpu.dma_semaphore, #tpu.memory_space<semaphore_mem>> -> memref<1x!tpu.dma_semaphore, #tpu.memory_space<semaphore_mem>>
        %92 = tpu.memref_squeeze %91 : memref<1x!tpu.dma_semaphore, #tpu.memory_space<semaphore_mem>> -> memref<!tpu.dma_semaphore, #tpu.memory_space<semaphore_mem>>
        tpu.enqueue_dma source(%89 : memref<1x256xf32, #tpu.memory_space<any>>) target(%90 : memref<1x256xf32, #tpu.memory_space<vmem>>) target_semaphore(%92 : memref<!tpu.dma_semaphore, #tpu.memory_space<semaphore_mem>>)
      }
      %c8_i32_38 = arith.constant 8 : i32
    } else {
    }
    %c0 = arith.constant 0 : index
    %c0_8 = arith.constant 0 : index
    %c0_9 = arith.constant 0 : index
    %17 = vector.load %arg6[%c0, %c0_8, %c0_9] : memref<1x8x1xi32, #tpu.memory_space<vmem>>, vector<1x8x1xi32>
    %18 = vector.shape_cast %17 : vector<1x8x1xi32> to vector<8x1xi32>
    %c0_10 = arith.constant 0 : index
    %c0_11 = arith.constant 0 : index
    %19 = vector.load %arg4[%c0_10, %c0_11] : memref<2x256xf32, #tpu.memory_space<vmem>>, vector<2x256xf32>
    %c0_12 = arith.constant 0 : index
    %c0_13 = arith.constant 0 : index
    %20 = vector.load %arg5[%c0_12, %c0_13] : memref<8x256xf32, #tpu.memory_space<vmem>>, vector<8x256xf32>
    %c0_i32_14 = arith.constant 0 : i32
    %21 = vector.broadcast %c0_i32_14 : i32 to vector<8x1xi32>
    %22 = arith.cmpi eq, %18, %21 : vector<8x1xi32>
    %23 = arith.extui %22 : vector<8x1xi1> to vector<8x1xi32>
    %24 = arith.sitofp %23 : vector<8x1xi32> to vector<8x1xf32>
    %25 = vector.extract_strided_slice %19 {offsets = [0, 0], sizes = [1, 256], strides = [1, 1]} : vector<2x256xf32> to vector<1x256xf32>
    %26 = vector.shape_cast %25 : vector<1x256xf32> to vector<256xf32>
    %27 = vector.shape_cast %26 : vector<256xf32> to vector<1x256xf32>
    %28 = vector.broadcast %24 : vector<8x1xf32> to vector<8x256xf32>
    %29 = vector.broadcast %27 : vector<1x256xf32> to vector<8x256xf32>
    %30 = arith.mulf %28, %29 : vector<8x256xf32>
    %31 = arith.addf %20, %30 : vector<8x256xf32>
    %c1_i32_15 = arith.constant 1 : i32
    %32 = vector.broadcast %c1_i32_15 : i32 to vector<8x1xi32>
    %33 = arith.cmpi eq, %18, %32 : vector<8x1xi32>
    %34 = arith.extui %33 : vector<8x1xi1> to vector<8x1xi32>
    %35 = arith.sitofp %34 : vector<8x1xi32> to vector<8x1xf32>
    %36 = vector.extract_strided_slice %19 {offsets = [1, 0], sizes = [1, 256], strides = [1, 1]} : vector<2x256xf32> to vector<1x256xf32>
    %37 = vector.shape_cast %36 : vector<1x256xf32> to vector<256xf32>
    %38 = vector.shape_cast %37 : vector<256xf32> to vector<1x256xf32>
    %39 = vector.broadcast %35 : vector<8x1xf32> to vector<8x256xf32>
    %40 = vector.broadcast %38 : vector<1x256xf32> to vector<8x256xf32>
    %41 = arith.mulf %39, %40 : vector<8x256xf32>
    %42 = arith.addf %31, %41 : vector<8x256xf32>
    %c0_i32_16 = arith.constant 0 : i32
    %c8_i32 = arith.constant 8 : i32
    %43 = arith.addi %c0_i32_16, %c8_i32 : i32
    %c1_i32_17 = arith.constant 1 : i32
    scf.for %arg12 = %c0_i32_16 to %43 step %c1_i32_17  : i32 {
      %c0_i32_31 = arith.constant 0 : i32
      %c0_i32_32 = arith.constant 0 : i32
      %76 = tpu.memref_slice %arg3[%c0_i32_31, %c0_i32_32] : memref<128x256xf32, #tpu.memory_space<any>> -> memref<1x256xf32, #tpu.memory_space<any>>
      %c0_i32_33 = arith.constant 0 : i32
      %c0_i32_34 = arith.constant 0 : i32
      %77 = tpu.memref_slice %arg10[%c0_i32_33, %c0_i32_34] : memref<16x256xf32, #tpu.memory_space<vmem>> -> memref<1x256xf32, #tpu.memory_space<vmem>>
      %78 = tpu.memref_slice %arg11[%9] : memref<2x!tpu.dma_semaphore, #tpu.memory_space<semaphore_mem>> -> memref<1x!tpu.dma_semaphore, #tpu.memory_space<semaphore_mem>>
      %79 = tpu.memref_squeeze %78 : memref<1x!tpu.dma_semaphore, #tpu.memory_space<semaphore_mem>> -> memref<!tpu.dma_semaphore, #tpu.memory_space<semaphore_mem>>
      tpu.wait_dma2 semaphore(%79 : memref<!tpu.dma_semaphore, #tpu.memory_space<semaphore_mem>>) src(%76 : memref<1x256xf32, #tpu.memory_space<any>>) dst(%77 : memref<1x256xf32, #tpu.memory_space<vmem>>)
    }
    %c8_i32_18 = arith.constant 8 : i32
    %44 = arith.muli %9, %c8_i32_18 : i32
    %45 = tpu.assume_multiple %44, 8 : i32
    %46 = arith.index_cast %45 : i32 to index
    %c0_19 = arith.constant 0 : index
    %47 = vector.load %arg10[%46, %c0_19] : memref<16x256xf32, #tpu.memory_space<vmem>>, vector<8x256xf32>
    %48 = arith.addf %47, %42 : vector<8x256xf32>
    %cst = arith.constant dense<0.000000e+00> : vector<8xf32>
    %49 = vector.multi_reduction <add>, %48, %cst [1] : vector<8x256xf32> to vector<8xf32>
    %50 = vector.shape_cast %49 : vector<8xf32> to vector<8x1xf32>
    %cst_20 = arith.constant 2.560000e+02 : f32
    %51 = vector.broadcast %cst_20 : f32 to vector<8x1xf32>
    %52 = arith.divf %50, %51 : vector<8x1xf32>
    %53 = arith.mulf %48, %48 : vector<8x256xf32>
    %cst_21 = arith.constant dense<0.000000e+00> : vector<8xf32>
    %54 = vector.multi_reduction <add>, %53, %cst_21 [1] : vector<8x256xf32> to vector<8xf32>
    %55 = vector.shape_cast %54 : vector<8xf32> to vector<8x1xf32>
    %cst_22 = arith.constant 2.560000e+02 : f32
    %56 = vector.broadcast %cst_22 : f32 to vector<8x1xf32>
    %57 = arith.divf %55, %56 : vector<8x1xf32>
    %58 = arith.mulf %52, %52 : vector<8x1xf32>
    %59 = arith.subf %57, %58 : vector<8x1xf32>
    %cst_23 = arith.constant 9.99999996E-13 : f32
    %60 = vector.broadcast %cst_23 : f32 to vector<8x1xf32>
    %61 = arith.addf %59, %60 : vector<8x1xf32>
    %62 = math.rsqrt %61 : vector<8x1xf32>
    %c0_24 = arith.constant 0 : index
    %c0_25 = arith.constant 0 : index
    %63 = vector.load %arg7[%c0_24, %c0_25] : memref<1x256xf32, #tpu.memory_space<vmem>>, vector<1x256xf32>
    %c0_26 = arith.constant 0 : index
    %c0_27 = arith.constant 0 : index
    %64 = vector.load %arg8[%c0_26, %c0_27] : memref<1x256xf32, #tpu.memory_space<vmem>>, vector<1x256xf32>
    %65 = vector.broadcast %52 : vector<8x1xf32> to vector<8x256xf32>
    %66 = arith.subf %48, %65 : vector<8x256xf32>
    %67 = vector.broadcast %62 : vector<8x1xf32> to vector<8x256xf32>
    %68 = arith.mulf %66, %67 : vector<8x256xf32>
    %69 = vector.broadcast %63 : vector<1x256xf32> to vector<8x256xf32>
    %70 = arith.mulf %68, %69 : vector<8x256xf32>
    %71 = vector.broadcast %64 : vector<1x256xf32> to vector<8x256xf32>
    %72 = arith.addf %70, %71 : vector<8x256xf32>
    %c0_28 = arith.constant 0 : index
    %c0_29 = arith.constant 0 : index
    %c0_30 = arith.constant 0 : index
    %73 = vector.load %arg9[%c0_28, %c0_29, %c0_30] : memref<1x8x256xf32, #tpu.memory_space<vmem>>, vector<1x8x256xf32>
    %74 = vector.shape_cast %73 : vector<1x8x256xf32> to vector<8x256xf32>
    %75 = vector.shape_cast %72 : vector<8x256xf32> to vector<1x8x256xf32>
    tpu.vector_store %arg9[%c0_28, %c0_29, %c0_30], %75 {strides = array<i32>} : memref<1x8x256xf32, #tpu.memory_space<vmem>>, vector<1x8x256xf32>,
    return
  }
  func.func @transform_1(%arg0: i32, %arg1: i32, %arg2: memref<32xi32, #tpu.memory_space<smem>>) -> (i32, i32) {
    %c0_i32 = arith.constant 0 : i32
    %c0_i32_0 = arith.constant 0 : i32
    %c0_i32_1 = arith.constant 0 : i32
    return %c0_i32, %c0_i32_0 : i32, i32
  }
  func.func @transform_2(%arg0: i32, %arg1: i32, %arg2: memref<32xi32, #tpu.memory_space<smem>>) -> (i32, i32) {
    %c0_i32 = arith.constant 0 : i32
    %c0_i32_0 = arith.constant 0 : i32
    return %arg0, %c0_i32 : i32, i32
  }
  func.func @transform_3(%arg0: i32, %arg1: i32, %arg2: memref<32xi32, #tpu.memory_space<smem>>) -> (i32, i32, i32) {
    %c0_i32 = arith.constant 0 : i32
    %c0_i32_0 = arith.constant 0 : i32
    return %arg1, %arg0, %c0_i32 : i32, i32, i32
  }
  func.func @transform_4(%arg0: i32, %arg1: i32, %arg2: memref<32xi32, #tpu.memory_space<smem>>) -> (i32, i32) {
    %c0_i32 = arith.constant 0 : i32
    %c0_i32_0 = arith.constant 0 : i32
    %c0_i32_1 = arith.constant 0 : i32
    return %c0_i32, %c0_i32_0 : i32, i32
  }
  func.func @transform_5(%arg0: i32, %arg1: i32, %arg2: memref<32xi32, #tpu.memory_space<smem>>) -> (i32, i32) {
    %c0_i32 = arith.constant 0 : i32
    %c0_i32_0 = arith.constant 0 : i32
    %c0_i32_1 = arith.constant 0 : i32
    return %c0_i32, %c0_i32_0 : i32, i32
  }
  func.func @transform_6(%arg0: i32, %arg1: i32, %arg2: memref<32xi32, #tpu.memory_space<smem>>) -> (i32, i32, i32) {
    %c0_i32 = arith.constant 0 : i32
    %c0_i32_0 = arith.constant 0 : i32
    return %arg1, %arg0, %c0_i32 : i32, i32, i32
  }
}

</mosaic_0001>

<llo_original>
// kernel: tpu_custom_call.1
$region0: #{tpu_custom_call.1}
  #allocation0 [shape = 'u32[]', space=smem, size = 0x4, offset = 0x4, fixed_abs, tag = 'smem constant byte address 0x4 - core index']
  #allocation1 [shape = 'u32[144,128]{1,0:T(1,128)}', space=vmem, size = 0x12000, scoped, tag = 'internal scratch']
  #allocation2 [shape = 'f32[16,256]{1,0:T(8,128)}', space=vmem, size = 0x4000, scoped, tag = 'scratch operand']
  #allocation3 [shape = 's32[2]{0}', space=sflag, size = 0x8, scoped, tag = 'scratch operand']
  #allocation4 [shape = 's32[1]{0}', space=sflag, size = 0x4, scoped, tag = 'scoped memory for tpu_custom_call.1']
  #allocation5 [shape = 'u8[512]{0}', space=smem, size = 0x200, scoped, tag = 'prefetched SMEM operand 0']
  #allocation8 [shape = 's32[]', space=sflag, size = 0x4, offset = 0, fixed_abs, tag = 'sflag constant byte address 0x0 - dummy sync flag']
  #allocation9 [shape = 's32[]', space=sflag, size = 0x4, offset = 0, fixed_abs, tag = 'sflag constant byte address 0x0 - dummy sync flag']
  %s0 = inlined_call_operand.vmem [shape: s32[32], index: 0, kind: input, shape index: {}]
  %s1 = inlined_call_operand.hbm [shape: f32[128,256], index: 1, kind: input, shape index: {}]
  %s2 = inlined_call_operand.vmem [shape: f32[2,256], index: 2, kind: input, shape index: {}]
  %s3 = inlined_call_operand.vmem [shape: f32[16,256], index: 3, kind: input, shape index: {}]
  %s4 = inlined_call_operand.vmem [shape: s32[2,16,1], index: 4, kind: input, shape index: {}]
  %s5 = inlined_call_operand.vmem [shape: f32[1,256], index: 5, kind: input, shape index: {}]
  %s6 = inlined_call_operand.vmem [shape: f32[1,256], index: 6, kind: input, shape index: {}]
  %s7 = inlined_call_operand.hbm [shape: f32[2,16,256], index: 7, kind: output, shape index: {}]
  %s8 = sld [smem:[#allocation0]]
  $region82: #{tpu_custom_call.1} parent=0
    _
  %s10 = ssub.s32 1, %s8
  %s11 = scalar_select 0, %s10, %s8
  %s12 = sshll.u32 %s0, 4
  %s13 = int_to_ptr.vmem [resolvable:$true] %s12
  %15 = dma.vmem_to_smem %s13, 16, [#allocation5], [#allocation4]
  %16 = dma.done [#allocation4], 16
  %17 = sfence
  $region1: #{tpu_custom_call.1} parent=0
    #allocation6 [shape = 'u8[16384]{0}', space=vmem, size = 0x4000, scoped, tag = 'output window, operand 0']
    #allocation7 [shape = 's32[2]{0}', space=sflag, size = 0x8, scoped, tag = 'scoped memory for tpu_custom_call.1']
    %18 = vsyncpa [#allocation7], 0
    %s19 = scalar_lea.sflag [#allocation7], 1
    %20 = vsyncpa %s19, 0
    loop: start=0, step=1, limit=6
    $region2: #{tpu_custom_call.1} parent=1 // loop_pre_header
      _
    $region3: #{tpu_custom_call.1} parent=1 // loop_header
      %s22 = sphi 0, %s26
      %p23 = scmp.ge.s32.totalorder %s22, 6
      %s29 = sphi 0, %s41
      %s30 = sphi 0, %s37
      %s31 = sphi 0, %s29
      %s32 = sphi 0, %s30
      %s33 = sphi 0, %s31
      %s34 = sphi 0, %s32
      %s42 = sphi 0, %s42
      %s44 = sphi 0, %s42
      %s45 = sphi 0, %s44
      %s59 = sphi 0, %s45
      %s65 = sphi 0, %s67
      %s68 = sphi 0, %s65
      %s69 = sphi 0, %s68
      %s85 = sphi 0, %s69
      %s93 = sphi 0, %s95
      %s96 = sphi 0, %s93
      %s97 = sphi 0, %s96
      %s113 = sphi 0, %s97
      %s117 = sphi 0, %s117
      %s119 = sphi 0, %s117
      %s120 = sphi 0, %s119
      %s134 = sphi 0, %s120
      %s138 = sphi 0, %s138
      %s140 = sphi 0, %s138
      %s141 = sphi 0, %s140
      %s155 = sphi 0, %s141
      %s163 = sphi 0, %s165
      %s166 = sphi 0, %s163
      %s167 = sphi 0, %s166
      %s183 = sphi 0, %s167
    $region4: #{tpu_custom_call.1} parent=1 // loop_header_branch
      %25 = sbr.rel (%p23) target = $region8
    $region5: #{tpu_custom_call.1} parent=1 // loop_body
      %s27 = ssub.s32 %s22, 1
      %s28 = ssub.s32 %s22, 2
      %s35 = sadd.s32 1, %s30
      %p36 = scmp.ge.s32.totalorder %s35, 2
      %s37 = scalar_select %p36, 0, %s35
      %s38 = sadd.s32 1, %s29
      %s39 = scalar_select %p36, %s38, %s29
      %p40 = scmp.ge.s32.totalorder %s39, 2
      %s41 = scalar_select %p40, 0, %s39
      %s43 = sadd.s32 %s42, 1
      %p46 = scmp.eq.s32.totalorder %s22, 3
      %p47 = scmp.ne.s32.totalorder %s42, %s44
      %p48 = scmp.eq.s32.totalorder %s22, 0
      %p49 = por %p47, %p48
      %p50 = scmp.ne.s32.totalorder %s42, %s44
      %p51 = scmp.eq.s32.totalorder %s27, 3
      %p52 = por %p50, %p51
      %p53 = scmp.ne.s32.totalorder %s44, %s45
      %p54 = scmp.eq.s32.totalorder %s27, 0
      %p55 = por %p53, %p54
      %p56 = scmp.ne.s32.totalorder %s44, %s45
      %p57 = scmp.eq.s32.totalorder %s28, 3
      %p58 = por %p56, %p57
      %p60 = scmp.ne.s32.totalorder %s45, %s59
      %p61 = scmp.eq.s32.totalorder %s28, 0
      %p62 = por %p60, %p61
      %s63 = ssub.s32 %s29, %s41
      %p64 = scmp.eq.s32.totalorder %s63, 0
      %s66 = sadd.s32 %s65, 1
      %s67 = scalar_select %p64, %s65, %s66
      %p70 = pneg %p64
      %p71 = scmp.eq.s32.totalorder %s22, 3
      %p72 = por %p70, %p71
      %p73 = scmp.ne.s32.totalorder %s65, %s68
      %p74 = scmp.eq.s32.totalorder %s22, 0
      %p75 = por %p73, %p74
      %p76 = scmp.ne.s32.totalorder %s65, %s68
      %p77 = scmp.eq.s32.totalorder %s27, 3
      %p78 = por %p76, %p77
      %p79 = scmp.ne.s32.totalorder %s68, %s69
      %p80 = scmp.eq.s32.totalorder %s27, 0
      %p81 = por %p79, %p80
      %p82 = scmp.ne.s32.totalorder %s68, %s69
      %p83 = scmp.eq.s32.totalorder %s28, 3
      %p84 = por %p82, %p83
      %p86 = scmp.ne.s32.totalorder %s69, %s85
      %p87 = scmp.eq.s32.totalorder %s28, 0
      %p88 = por %p86, %p87
      %s89 = ssub.s32 %s30, %s37
      %s90 = ssub.s32 %s29, %s41
      %s91 = sor.u32 %s89, %s90
      %p92 = scmp.eq.s32.totalorder %s91, 0
      %s94 = sadd.s32 %s93, 1
      %s95 = scalar_select %p92, %s93, %s94
      %p98 = pneg %p92
      %p99 = scmp.eq.s32.totalorder %s22, 3
      %p100 = por %p98, %p99
      %p101 = scmp.ne.s32.totalorder %s93, %s96
      %p102 = scmp.eq.s32.totalorder %s22, 0
      %p103 = por %p101, %p102
      %p104 = scmp.ne.s32.totalorder %s93, %s96
      %p105 = scmp.eq.s32.totalorder %s27, 3
      %p106 = por %p104, %p105
      %p107 = scmp.ne.s32.totalorder %s96, %s97
      %p108 = scmp.eq.s32.totalorder %s27, 0
      %p109 = por %p107, %p108
      %p110 = scmp.ne.s32.totalorder %s96, %s97
      %p111 = scmp.eq.s32.totalorder %s28, 3
      %p112 = por %p110, %p111
      %p114 = scmp.ne.s32.totalorder %s97, %s113
      %p115 = scmp.eq.s32.totalorder %s28, 0
      %p116 = por %p114, %p115
      %s118 = sadd.s32 %s117, 1
      %p121 = scmp.eq.s32.totalorder %s22, 3
      %p122 = scmp.ne.s32.totalorder %s117, %s119
      %p123 = scmp.eq.s32.totalorder %s22, 0
      %p124 = por %p122, %p123
      %p125 = scmp.ne.s32.totalorder %s117, %s119
      %p126 = scmp.eq.s32.totalorder %s27, 3
      %p127 = por %p125, %p126
      %p128 = scmp.ne.s32.totalorder %s119, %s120
      %p129 = scmp.eq.s32.totalorder %s27, 0
      %p130 = por %p128, %p129
      %p131 = scmp.ne.s32.totalorder %s119, %s120
      %p132 = scmp.eq.s32.totalorder %s28, 3
      %p133 = por %p131, %p132
      %p135 = scmp.ne.s32.totalorder %s120, %s134
      %p136 = scmp.eq.s32.totalorder %s28, 0
      %p137 = por %p135, %p136
      %s139 = sadd.s32 %s138, 1
      %p142 = scmp.eq.s32.totalorder %s22, 3
      %p143 = scmp.ne.s32.totalorder %s138, %s140
      %p144 = scmp.eq.s32.totalorder %s22, 0
      %p145 = por %p143, %p144
      %p146 = scmp.ne.s32.totalorder %s138, %s140
      %p147 = scmp.eq.s32.totalorder %s27, 3
      %p148 = por %p146, %p147
      %p149 = scmp.ne.s32.totalorder %s140, %s141
      %p150 = scmp.eq.s32.totalorder %s27, 0
      %p151 = por %p149, %p150
      %p152 = scmp.ne.s32.totalorder %s140, %s141
      %p153 = scmp.eq.s32.totalorder %s28, 3
      %p154 = por %p152, %p153
      %p156 = scmp.ne.s32.totalorder %s141, %s155
      %p157 = scmp.eq.s32.totalorder %s28, 0
      %p158 = por %p156, %p157
      %s159 = ssub.s32 %s30, %s37
      %s160 = ssub.s32 %s29, %s41
      %s161 = sor.u32 %s159, %s160
      %p162 = scmp.eq.s32.totalorder %s161, 0
      %s164 = sadd.s32 %s163, 1
      %s165 = scalar_select %p162, %s163, %s164
      %p168 = pneg %p162
      %p169 = scmp.eq.s32.totalorder %s22, 3
      %p170 = por %p168, %p169
      %p171 = scmp.ne.s32.totalorder %s163, %s166
      %p172 = scmp.eq.s32.totalorder %s22, 0
      %p173 = por %p171, %p172
      %p174 = scmp.ne.s32.totalorder %s163, %s166
      %p175 = scmp.eq.s32.totalorder %s27, 3
      %p176 = por %p174, %p175
      %p177 = scmp.ne.s32.totalorder %s166, %s167
      %p178 = scmp.eq.s32.totalorder %s27, 0
      %p179 = por %p177, %p178
      %p180 = scmp.ne.s32.totalorder %s166, %s167
      %p181 = scmp.eq.s32.totalorder %s28, 3
      %p182 = por %p180, %p181
      %p184 = scmp.ne.s32.totalorder %s167, %s183
      %p185 = scmp.eq.s32.totalorder %s28, 0
      %p186 = por %p184, %p185
      %p187 = scmp.le.s32.totalorder 1, %s22
      %p188 = scmp.lt.s32.totalorder %s22, 5
      %p189 = pnand %p187, %p188
      %p190 = pneg %p189
      // Predicated region
      $region9: #{tpu_custom_call.1} parent=5 // pred_check
        _
      $region10: #{tpu_custom_call.1} parent=5 // pred_check_branch
        %192 = sbr.rel (%p189) target = $region12
      $region11: #{tpu_custom_call.1} parent=5 // pred_region
        %s193 = ssub.s32 %s22, 1
        // Predicated region
        $region13: #{tpu_custom_call.1} parent=11 // pred_check
          %p194 = pneg %p55
        $region14: #{tpu_custom_call.1} parent=11 // pred_check_branch
          %196 = sbr.rel (%p194) target = $region16
        $region15: #{tpu_custom_call.1} parent=11 // pred_region
          _
        $region16: #{tpu_custom_call.1} parent=11 // pred_fallthru
          _
        // Predicated region
        $region17: #{tpu_custom_call.1} parent=11 // pred_check
          %p197 = pneg %p130
        $region18: #{tpu_custom_call.1} parent=11 // pred_check_branch
          %199 = sbr.rel (%p197) target = $region20
        $region19: #{tpu_custom_call.1} parent=11 // pred_region
          _
        $region20: #{tpu_custom_call.1} parent=11 // pred_fallthru
          _
        // Predicated region
        $region21: #{tpu_custom_call.1} parent=11 // pred_check
          %p200 = pneg %p151
        $region22: #{tpu_custom_call.1} parent=11 // pred_check_branch
          %202 = sbr.rel (%p200) target = $region24
        $region23: #{tpu_custom_call.1} parent=11 // pred_region
          _
        $region24: #{tpu_custom_call.1} parent=11 // pred_fallthru
          _
      $region12: #{tpu_custom_call.1} parent=5 // pred_fallthru
        _
      %p203 = scmp.lt.s32.totalorder %s22, 4
      // Predicated region
      $region25: #{tpu_custom_call.1} parent=5 // pred_check
        %p204 = pneg %p203
      $region26: #{tpu_custom_call.1} parent=5 // pred_check_branch
        %206 = sbr.rel (%p204) target = $region28
      $region27: #{tpu_custom_call.1} parent=5 // pred_region
        // Predicated region
        $region29: #{tpu_custom_call.1} parent=27 // pred_check
          %p207 = pneg %p75
        $region30: #{tpu_custom_call.1} parent=27 // pred_check_branch
          %209 = sbr.rel (%p207) target = $region32
        $region31: #{tpu_custom_call.1} parent=27 // pred_region
          %p210 = scmp.lt.s32.totalorder %s29, 1
          %s211 = scalar_select %p210, %s29, 1
          %s212 = smul.addr %s211, 2
          %s213 = smul.addr %s212, 8
          %s214 = scalar_lea.vmem %s3, %s213
        $region32: #{tpu_custom_call.1} parent=27 // pred_fallthru
          _
        // Predicated region
        $region33: #{tpu_custom_call.1} parent=27 // pred_check
          %p215 = pneg %p103
        $region34: #{tpu_custom_call.1} parent=27 // pred_check_branch
          %217 = sbr.rel (%p215) target = $region36
        $region35: #{tpu_custom_call.1} parent=27 // pred_region
          %p218 = scmp.lt.s32.totalorder %s30, 1
          %s219 = scalar_select %p218, %s30, 1
          %p220 = scmp.lt.s32.totalorder %s29, 1
          %s221 = scalar_select %p220, %s29, 1
          %s222 = smul.addr %s219, 2
          %s223 = sadd.s32 %s221, %s222
          %s224 = smul.addr %s223, 8
          %s225 = scalar_lea.vmem %s4, %s224
        $region36: #{tpu_custom_call.1} parent=27 // pred_fallthru
          _
      $region28: #{tpu_custom_call.1} parent=5 // pred_fallthru
        _
      %p226 = scmp.le.s32.totalorder 1, %s22
      %p227 = scmp.lt.s32.totalorder %s22, 5
      %p228 = pnand %p226, %p227
      %p229 = pneg %p228
      // Predicated region
      $region37: #{tpu_custom_call.1} parent=5 // pred_check
        _
      $region38: #{tpu_custom_call.1} parent=5 // pred_check_branch
        %231 = sbr.rel (%p228) target = $region40
      $region39: #{tpu_custom_call.1} parent=5 // pred_region
        %s232 = ssub.s32 %s22, 1
        %p233 = pneg %p55
        %p234 = pneg %p52
        %p235 = scmp.lt.s32.totalorder %s31, 1
        %s236 = scalar_select %p235, %s31, 1
        %s237 = smul.addr %s236, 2
        %s238 = smul.addr %s237, 8
        %s239 = scalar_lea.vmem %s3, %s238
        %p240 = pneg %p81
        %p241 = pneg %p78
        %p242 = scmp.lt.s32.totalorder %s32, 1
        %s243 = scalar_select %p242, %s32, 1
        %p244 = scmp.lt.s32.totalorder %s31, 1
        %s245 = scalar_select %p244, %s31, 1
        %s246 = smul.addr %s243, 2
        %s247 = sadd.s32 %s245, %s246
        %s248 = smul.addr %s247, 8
        %s249 = scalar_lea.vmem %s4, %s248
        %p250 = pneg %p109
        %p251 = pneg %p106
        %p252 = pneg %p130
        %p253 = pneg %p127
        %p254 = pneg %p151
        %p255 = pneg %p148
        %p256 = pneg %p179
        %p257 = pneg %p176
        %s258 = sand.u32 %s166, 1
        %s259 = scalar_lea.sflag [#allocation7], %s258
        %s260 = sand.u32 %s166, 1
        %s261 = smul.addr %s260, 16
        %s262 = scalar_lea.vmem [#allocation6], %s261
        %p263 = scmp.lt.s32.totalorder %s31, 1
        %s264 = scalar_select %p263, %s31, 1
        %s265 = smul.addr %s264, 2
        %s266 = smul.addr %s265, 8
        %s267 = scalar_lea.vmem %s3, %s266
        %p268 = scmp.lt.s32.totalorder %s32, 1
        %s269 = scalar_select %p268, %s32, 1
        %p270 = scmp.lt.s32.totalorder %s31, 1
        %s271 = scalar_select %p270, %s31, 1
        %s272 = smul.addr %s269, 2
        %s273 = sadd.s32 %s271, %s272
        %s274 = smul.addr %s273, 8
        %s275 = scalar_lea.vmem %s4, %s274
        %p276 = scmp.lt.s32.totalorder %s32, 0
        %s277 = ssub.s32 0, %s32
        %s278 = scalar_select %p276, %s277, %s32
        %s279 = sand.u32 %s278, 1
        %s280 = ssub.s32 0, %s279
        %s281 = scalar_select %p276, %s280, %s279
        %p282 = scmp.ne.s32.totalorder %s281, 0
        %p283 = scmp.lt.s32.totalorder %s281, 0
        %p284 = pnand %p283, %p282
        %p285 = pneg %p284
        %s286 = sadd.s32 %s281, 2
        %s287 = scalar_select %p285, %s286, %s281
        %p288 = scmp.eq.s32.totalorder %s32, 0
        // Predicated region
        $region41: #{tpu_custom_call.1} parent=39 // pred_check
          %p289 = pneg %p288
        $region42: #{tpu_custom_call.1} parent=39 // pred_check_branch
          %291 = sbr.rel (%p289) target = $region44
        $region43: #{tpu_custom_call.1} parent=39 // pred_region
          %s292 = smul.u32 %s31, 8
          loop: start=0, step=1, limit=8
          $region45: #{tpu_custom_call.1} parent=43 // loop_pre_header
            _
          $region46: #{tpu_custom_call.1} parent=43 // loop_header
            %s294 = sphi 0, %s298
            %p295 = scmp.ge.s32.totalorder %s294, 8
          $region47: #{tpu_custom_call.1} parent=43 // loop_header_branch
            %297 = sbr.rel (%p295) target = $region51
          $region48: #{tpu_custom_call.1} parent=43 // loop_body
            %s299 = sadd.s32 %s292, %s294
            %s300 = sld [smem:[#allocation5 + %s299]]
            %p301 = scmp.gt.s32.totalorder %s300, 0
            %s302 = scalar_select %p301, %s300, 0
            %p303 = scmp.lt.s32.totalorder %s302, 127
            %s304 = scalar_select %p303, %s302, 127
            %s305 = sshrl.u32 %s304, 3
            %s306 = sand.u32 %s304, 7
            %s307 = smul.u32 %s305, 16
            %s308 = sadd.s32 %s306, %s307
            %s309 = smul.addr %s308, 16
            %s310 = scalar_lea.hbm %s1, %s309
            %s311 = sshrl.u32 %s294, 3
            %s312 = sand.u32 %s294, 7
            %s313 = smul.u32 %s311, 16
            %s314 = sadd.s32 %s312, %s313
            %s315 = scalar_lea.vmem [#allocation2], %s314
            %s317 = sshll.u32 %s315, 4
            %s318 = int_to_ptr.vmem [resolvable:$true] %s317
            %320 = dma.hbm_to_vmem [thread:$0]  %s310, 32, %s318, [#allocation3], 128, 128, 1
          $region49: #{tpu_custom_call.1} parent=43 // loop_footer
            %s298 = sadd.s32 1, %s294
          $region50: #{tpu_custom_call.1} parent=43 // loop_footer_branch
            %293 = sbr.rel target = $region46
          $region51: #{tpu_custom_call.1} parent=43 // loop_exit
            _
        $region44: #{tpu_custom_call.1} parent=39 // pred_fallthru
          _
        %s321 = sadd.s32 %s32, 1
        %p322 = scmp.lt.s32.totalorder %s321, 2
        // Predicated region
        $region52: #{tpu_custom_call.1} parent=39 // pred_check
          %p323 = pneg %p322
        $region53: #{tpu_custom_call.1} parent=39 // pred_check_branch
          %325 = sbr.rel (%p323) target = $region55
        $region54: #{tpu_custom_call.1} parent=39 // pred_region
          %s326 = ssub.s32 1, %s287
          %s327 = smul.u32 %s321, 16
          %s328 = smul.u32 %s31, 8
          %s329 = sadd.s32 %s327, %s328
          %s330 = smul.u32 %s326, 8
          loop: start=0, step=1, limit=8
          $region56: #{tpu_custom_call.1} parent=54 // loop_pre_header
            _
          $region57: #{tpu_custom_call.1} parent=54 // loop_header
            %s332 = sphi 0, %s336
            %p333 = scmp.ge.s32.totalorder %s332, 8
          $region58: #{tpu_custom_call.1} parent=54 // loop_header_branch
            %335 = sbr.rel (%p333) target = $region62
          $region59: #{tpu_custom_call.1} parent=54 // loop_body
            %s337 = sadd.s32 %s329, %s332
            %s338 = sld [smem:[#allocation5 + %s337]]
            %p339 = scmp.gt.s32.totalorder %s338, 0
            %s340 = scalar_select %p339, %s338, 0
            %p341 = scmp.lt.s32.totalorder %s340, 127
            %s342 = scalar_select %p341, %s340, 127
            %s343 = sadd.s32 %s330, %s332
            %s344 = sshrl.u32 %s342, 3
            %s345 = sand.u32 %s342, 7
            %s346 = smul.u32 %s344, 16
            %s347 = sadd.s32 %s345, %s346
            %s348 = smul.addr %s347, 16
            %s349 = scalar_lea.hbm %s1, %s348
            %s350 = sshrl.u32 %s343, 3
            %s351 = sand.u32 %s343, 7
            %s352 = smul.u32 %s350, 16
            %s353 = sadd.s32 %s351, %s352
            %s354 = scalar_lea.vmem [#allocation2], %s353
            %s355 = scalar_lea.sflag [#allocation3], %s326
            %s357 = sshll.u32 %s354, 4
            %s358 = int_to_ptr.vmem [resolvable:$true] %s357
            %360 = dma.hbm_to_vmem [thread:$0]  %s349, 32, %s358, %s355, 128, 128, 1
          $region60: #{tpu_custom_call.1} parent=54 // loop_footer
            %s336 = sadd.s32 1, %s332
          $region61: #{tpu_custom_call.1} parent=54 // loop_footer_branch
            %331 = sbr.rel target = $region57
          $region62: #{tpu_custom_call.1} parent=54 // loop_exit
            _
        $region55: #{tpu_custom_call.1} parent=39 // pred_fallthru
          _
        %v361 = vld [vmem:[%s275] sm:$0xff]
        %v362 = vld [vmem:[%s2] sm:$0xf]
        %v363 = vld [vmem:[%s267] sm:$0xff]
        %v364 = vld [vmem:[%s267 + $0x8] sm:$0xff]
        %vm365 = vcmp.eq.s32.totalorder %v361, 0
        %v366 = vsel %vm365, 1, 0
        %v367 = vcvt.s32.f32 %v366
        %369 = vset.pattern.permute.xlu0 0
        %370 = vperm.xlu0 %369, %v367
        %v371 = vpop.permute.xlu0 %370
        %v374 = vlaneseq
        %v375 = vshrl.u32 %v374, 7
        %v376 = vsub.s32 0, %v375
        %v377 = vrot.slane %v362, %v376
        %v378 = vlaneseq
        %v379 = vshrl.u32 %v378, 7
        %v380 = vsub.s32 2, %v379
        %v381 = vrot.slane %v362, %v380
        %v384 = vlaneseq
        %v385 = vshrl.u32 %v384, 7
        %v386 = vsub.s32 0, %v385
        %v387 = vrot.slane %v377, %v386
        %v388 = vlaneseq
        %v389 = vshrl.u32 %v388, 7
        %v390 = vsub.s32 0, %v389
        %v391 = vrot.slane %v381, %v390
        %v392 = vmul.f32 %v371, %v387
        %v393 = vmul.f32 %v371, %v391
        %v394 = vadd.f32 %v363, %v392
        %v395 = vadd.f32 %v364, %v393
        %vm396 = vcmp.eq.s32.totalorder %v361, 1
        %v397 = vsel %vm396, 1, 0
        %v398 = vcvt.s32.f32 %v397
        %400 = vset.pattern.permute.xlu0 0
        %401 = vperm.xlu0 %400, %v398
        %v402 = vpop.permute.xlu0 %401
        %v404 = vlaneseq
        %v405 = vshrl.u32 %v404, 7
        %v406 = vsub.s32 1, %v405
        %v407 = vrot.slane %v362, %v406
        %v408 = vlaneseq
        %v409 = vshrl.u32 %v408, 7
        %v410 = vsub.s32 3, %v409
        %v411 = vrot.slane %v362, %v410
        %v414 = vlaneseq
        %v415 = vshrl.u32 %v414, 7
        %v416 = vsub.s32 1, %v415
        %v417 = vrot.slane %v407, %v416
        %v418 = vlaneseq
        %v419 = vshrl.u32 %v418, 7
        %v420 = vsub.s32 1, %v419
        %v421 = vrot.slane %v411, %v420
        %v422 = vmul.f32 %v402, %v417
        %v423 = vmul.f32 %v402, %v421
        %v424 = vadd.f32 %v394, %v422
        %v425 = vadd.f32 %v395, %v423
        loop: start=0, step=1, limit=8
        $region63: #{tpu_custom_call.1} parent=39 // loop_pre_header
          _
        $region64: #{tpu_custom_call.1} parent=39 // loop_header
          %s427 = sphi 0, %s431
          %p428 = scmp.ge.s32.totalorder %s427, 8
        $region65: #{tpu_custom_call.1} parent=39 // loop_header_branch
          %430 = sbr.rel (%p428) target = $region69
        $region66: #{tpu_custom_call.1} parent=39 // loop_body
          %s432 = scalar_lea.sflag [#allocation3], %s287
          %s433 = smul.u32 1, 2
          %s434 = sshll.u32 %s433, 4
          %435 = dma.done %s432, %s434
        $region67: #{tpu_custom_call.1} parent=39 // loop_footer
          %s431 = sadd.s32 1, %s427
        $region68: #{tpu_custom_call.1} parent=39 // loop_footer_branch
          %426 = sbr.rel target = $region64
        $region69: #{tpu_custom_call.1} parent=39 // loop_exit
          _
        %s436 = smul.u32 %s287, 8
        %s437 = sshra.s32 %s436, 3
        %s438 = sand.u32 %s436, 7
        %s439 = smul.u32 %s437, 2
        %s440 = smul.addr %s439, 8
        %s441 = scalar_lea.vmem [#allocation2], %s440
        %v442 = vld [vmem:[%s441] sm:$0xff]
        %v443 = vld [vmem:[%s441 + $0x8] sm:$0xff]
        %v444 = vadd.f32 %v442, %v424
        %v445 = vadd.f32 %v443, %v425
        %v446 = vadd.f32 %v444, %v445
        %447 = vadd.xlane.f32.xlu0 %v446
        %v448 = vpop.xlane.xlu0 %447
        %v449 = vrcp.pop 256.0
        %v450 = vmul.f32 %v448, %v449
        %v451 = vmul.f32 %v444, %v444
        %v452 = vmul.f32 %v445, %v445
        %v453 = vadd.f32 %v451, %v452
        %454 = vadd.xlane.f32.xlu0 %v453
        %v455 = vpop.xlane.xlu0 %454
        %v456 = vmul.f32 %v455, %v449
        %v457 = vmul.f32 %v450, %v450
        %v458 = vsub.f32 %v456, %v457
        %v459 = vadd.f32 %v458, 1e-12
        %v460 = vrsqrt.pop %v459
        %v461 = vld [vmem:[%s5] sm:$0x3]
        %v462 = vld [vmem:[%s6] sm:$0x3]
        %v463 = vsub.f32 %v444, %v450
        %v464 = vsub.f32 %v445, %v450
        %v465 = vmul.f32 %v463, %v460
        %v466 = vmul.f32 %v464, %v460
        %v468 = vlaneseq
        %v469 = vshrl.u32 %v468, 7
        %v470 = vsub.s32 0, %v469
        %v471 = vrot.slane %v461, %v470
        %v472 = vlaneseq
        %v473 = vshrl.u32 %v472, 7
        %v474 = vsub.s32 1, %v473
        %v475 = vrot.slane %v461, %v474
        %v478 = vmul.f32 %v465, %v471
        %v479 = vmul.f32 %v466, %v475
        %v481 = vlaneseq
        %v482 = vshrl.u32 %v481, 7
        %v483 = vsub.s32 0, %v482
        %v484 = vrot.slane %v462, %v483
        %v485 = vlaneseq
        %v486 = vshrl.u32 %v485, 7
        %v487 = vsub.s32 1, %v486
        %v488 = vrot.slane %v462, %v487
        %v491 = vadd.f32 %v478, %v484
        %v492 = vadd.f32 %v479, %v488
        %493 = vst [vmem:[%s262] sm:$0xff] %v491
        %494 = vst [vmem:[%s262 + $0x8] sm:$0xff] %v492
        %s495 = sand.u32 %s166, 1
        %s496 = scalar_lea.sflag [#allocation7], %s495
        %s497 = sand.u32 %s166, 1
        %s498 = smul.addr %s497, 16
        %s499 = scalar_lea.vmem [#allocation6], %s498
        // Predicated region
        $region70: #{tpu_custom_call.1} parent=39 // pred_check
          %p500 = pneg %p176
        $region71: #{tpu_custom_call.1} parent=39 // pred_check_branch
          %502 = sbr.rel (%p500) target = $region73
        $region72: #{tpu_custom_call.1} parent=39 // pred_region
          %s504 = ssub.s32 256, 256
          %505 = vsyncadd %s496, %s504
          %s506 = smul.addr %s31, 2
          %s507 = smul.addr %s32, 4
          %s508 = sadd.s32 %s506, %s507
          %s509 = smul.addr %s508, 128
          %s510 = scalar_lea.hbm %s7, %s509
          %s512 = sshll.u32 %s499, 4
          %s513 = int_to_ptr.vmem [resolvable:$true] %s512
          %515 = dma.vmem_to_hbm [thread:$0]  %s513, 256, %s510, %s496
        $region73: #{tpu_custom_call.1} parent=39 // pred_fallthru
          _
      $region40: #{tpu_custom_call.1} parent=5 // pred_fallthru
        _
      %p516 = scmp.le.s32.totalorder 2, %s22
      // Predicated region
      $region74: #{tpu_custom_call.1} parent=5 // pred_check
        %p517 = pneg %p516
      $region75: #{tpu_custom_call.1} parent=5 // pred_check_branch
        %519 = sbr.rel (%p517) target = $region77
      $region76: #{tpu_custom_call.1} parent=5 // pred_region
        %s520 = ssub.s32 %s22, 2
        // Predicated region
        $region78: #{tpu_custom_call.1} parent=76 // pred_check
          %p521 = pneg %p182
        $region79: #{tpu_custom_call.1} parent=76 // pred_check_branch
          %523 = sbr.rel (%p521) target = $region81
        $region80: #{tpu_custom_call.1} parent=76 // pred_region
          %s524 = sand.u32 %s167, 1
          %s525 = scalar_lea.sflag [#allocation7], %s524
          %s526 = sand.u32 %s167, 1
          %s527 = smul.addr %s526, 16
          %s528 = scalar_lea.vmem [#allocation6], %s527
          %529 = dma.done %s525, 256
        $region81: #{tpu_custom_call.1} parent=76 // pred_fallthru
          _
      $region77: #{tpu_custom_call.1} parent=5 // pred_fallthru
        _
    $region6: #{tpu_custom_call.1} parent=1 // loop_footer
      %s26 = sadd.s32 1, %s22
    $region7: #{tpu_custom_call.1} parent=1 // loop_footer_branch
      %21 = sbr.rel target = $region3
    $region8: #{tpu_custom_call.1} parent=1 // loop_exit
      _
    %530 = vsyncpa [#allocation7], 1
    %s531 = scalar_lea.sflag [#allocation7], 1
    %532 = vsyncpa %s531, 1
  %533 = vsyncmov [#allocation3]
  %s534 = vpop.sfrf %533
  %p535 = scmp.eq.s32.totalorder %s534, 0
  %p536 = pneg %p535
  %538 = shalt.err (%p536)
  %s539 = scalar_lea.sflag [#allocation3], 1
  %540 = vsyncmov %s539
  %s541 = vpop.sfrf %540
  %p542 = scmp.eq.s32.totalorder %s541, 0
  %p543 = pneg %p542
  %545 = shalt.err (%p543)

</llo_original>
